<compile_context>
chip_gen: v7x
topology: tpu7x:2x2x1
jax: 0.10.0
libtpu: 0.0.40
codegen_flags: <defaults>
</compile_context>

<pallas_src>
import math

import jax
import jax.numpy as jnp
from jax import lax
from jax.experimental import pallas as pl
from jax.experimental.pallas import tpu as pltpu


def _round_up(x: int, m: int) -> int:
    return ((x + m - 1) // m) * m


def _make_kernel(t_total: int, t_blk: int, mask_t: bool):
    def kernel(p_ref, v_ref, o_ref, m_sc, l_sc, acc_sc):
        # p_ref : (B_blk, Fe)        pre-scaled projection (query @ W^T / sqrt(Fd))
        # v_ref : (B_blk, T_blk, Fe) values tile
        # o_ref : (B_blk, Fe)        context output (written on last T step)
        ti = pl.program_id(1)

        @pl.when(ti == 0)
        def _():
            m_sc[...] = jnp.full_like(m_sc, -jnp.inf)
            l_sc[...] = jnp.zeros_like(l_sc)
            acc_sc[...] = jnp.zeros_like(acc_sc)

        proj = p_ref[...].astype(jnp.float32)           # (B_blk, Fe)
        v = v_ref[...].astype(jnp.float32)              # (B_blk, T_blk, Fe)

        # scores[b, t] = sum_f proj[b, f] * v[b, t, f]  -> VPU mul + lane reduce
        scores = jnp.sum(proj[:, None, :] * v, axis=-1)  # (B_blk, T_blk)

        if mask_t:
            pos = ti * t_blk + lax.broadcasted_iota(jnp.int32, scores.shape, 1)
            scores = jnp.where(pos < t_total, scores, -jnp.inf)

        # Online softmax over the (tiled) time axis.
        m_prev = m_sc[...]
        m_new = jnp.maximum(m_prev, jnp.max(scores, axis=-1, keepdims=True))
        alpha = jnp.exp(m_prev - m_new)                  # (B_blk, 1)
        p = jnp.exp(scores - m_new)                      # (B_blk, T_blk)
        l_sc[...] = alpha * l_sc[...] + jnp.sum(p, axis=-1, keepdims=True)
        # ctx partial: sum_t p[b, t] * v[b, t, f]  -> VPU mul + sublane reduce
        acc_sc[...] = alpha * acc_sc[...] + jnp.sum(p[:, :, None] * v, axis=1)
        m_sc[...] = m_new

        @pl.when(ti == pl.num_programs(1) - 1)
        def _():
            inv = pl.reciprocal(l_sc[...], approx=True)  # EUP vrcp, ~free
            o_ref[...] = (acc_sc[...] * inv).astype(o_ref.dtype)

    return kernel


# Per-buffer VMEM budget for the values tile (double-buffered by Pallas).
_VALUES_TILE_BUDGET = 2 * 1024 * 1024  # bytes (f32 compute)


def multiplicative_attention(query, values, w):
    """query: (B, Fd), values: (B, T, Fe), w: (Fe, Fd) [torch Linear weight]."""
    B, Fd = query.shape
    _, T, Fe = values.shape
    assert w.shape == (Fe, Fd)

    # Hoisted projection (full-size MXU matmul done by XLA) with the scale folded in.
    scale = 1.0 / math.sqrt(Fd)  # decoder_dim = Fd
    proj = (query.astype(jnp.float32) @ w.T.astype(jnp.float32)) * scale  # (B, Fe)

    # ---- tile sizing -------------------------------------------------------
    b_blk = min(256, _round_up(B, 8))
    # keep B_blk small enough that even a minimal (T_blk=8) tile fits the budget
    max_b = max(8, (_VALUES_TILE_BUDGET // (8 * Fe * 4)) // 8 * 8)
    b_blk = max(8, min(b_blk, max_b))

    t8 = _round_up(T, 8)
    max_t = max(8, (_VALUES_TILE_BUDGET // (b_blk * Fe * 4)) // 8 * 8)
    t_blk = min(t8, max_t)

    b_pad = _round_up(B, b_blk)
    t_pad = _round_up(T, t_blk)
    mask_t = t_pad != T  # padded time positions must not contribute to softmax

    if b_pad != B or t_pad != T:
        proj_p = jnp.pad(proj, ((0, b_pad - B), (0, 0)))
        values_p = jnp.pad(values, ((0, b_pad - B), (0, t_pad - T), (0, 0)))
    else:
        proj_p, values_p = proj, values

    grid = (b_pad // b_blk, t_pad // t_blk)

    itemsize = jnp.dtype(values.dtype).itemsize
    cost = pl.CostEstimate(
        flops=4 * B * T * Fe,                    # scores + context
        transcendentals=B * (T + grid[1]),       # exp for p and alpha
        bytes_accessed=B * T * Fe * itemsize + 2 * B * Fe * 4,
    )

    out = pl.pallas_call(
        _make_kernel(T, t_blk, mask_t),
        out_shape=jax.ShapeDtypeStruct((b_pad, Fe), query.dtype),
        grid_spec=pltpu.PrefetchScalarGridSpec(
            num_scalar_prefetch=0,
            grid=grid,
            in_specs=[
                pl.BlockSpec((b_blk, Fe), lambda b, t: (b, 0)),
                pl.BlockSpec((b_blk, t_blk, Fe), lambda b, t: (b, t, 0)),
            ],
            out_specs=pl.BlockSpec((b_blk, Fe), lambda b, t: (b, 0)),
            scratch_shapes=[
                pltpu.VMEM((b_blk, 1), jnp.float32),    # running max m
                pltpu.VMEM((b_blk, 1), jnp.float32),    # running denom l
                pltpu.VMEM((b_blk, Fe), jnp.float32),   # running context acc
            ],
        ),
        compiler_params=pltpu.CompilerParams(
            dimension_semantics=("parallel", "arbitrary")),
        cost_estimate=cost,
    )(proj_p, values_p)

    return out[:B]


def _reference(query, values, w):
    proj = query @ w.T                                   # (B, Fe)
    scores = jnp.einsum("bf,btf->bt", proj, values)      # (B, T)
    scores = scores / jnp.sqrt(jnp.float32(query.shape[-1]))
    weights = jax.nn.softmax(scores, axis=1)
    return jnp.einsum("bt,btf->bf", weights, values)     # (B, Fe)


if __name__ == "__main__":
    B, T = 2, 8
    decoder_dim, encoder_dim = 32, 64

    key = jax.random.PRNGKey(0)
    kq, kv, kw = jax.random.split(key, 3)
    query = jax.random.normal(kq, (B, decoder_dim), dtype=jnp.float32)
    values = jax.random.normal(kv, (B, T, encoder_dim), dtype=jnp.float32)
    # nn.Linear(decoder_dim, encoder_dim, bias=False).weight -> (encoder_dim, decoder_dim)
    w = jax.random.normal(kw, (encoder_dim, decoder_dim), dtype=jnp.float32) * (
        1.0 / math.sqrt(decoder_dim))

    out = multiplicative_attention(query, values, w)
    out = jax.block_until_ready(out)

    ref = _reference(query, values, w)
    assert out.shape == (B, encoder_dim)
    # Tolerance loosened slightly for the approx (EUP) reciprocal (~2^-12 rel).
    assert jnp.allclose(out, ref, atol=2e-3, rtol=2e-3), (
        f"max err {jnp.max(jnp.abs(out - ref))}")
    print("KERNEL_OK")
</pallas_src>

<mosaic_0001>
module attributes {stable_mosaic.version = 11 : i64} {
  func.func @kernel(%arg0: i32, %arg1: i32, %arg2: memref<8x64xf32, #tpu.memory_space<vmem>>, %arg3: memref<8x8x64xf32, #tpu.memory_space<vmem>>, %arg4: memref<8x64xf32, #tpu.memory_space<vmem>>, %arg5: memref<8x1xf32, #tpu.memory_space<vmem>>, %arg6: memref<8x1xf32, #tpu.memory_space<vmem>>, %arg7: memref<8x64xf32, #tpu.memory_space<vmem>>) attributes {dimension_semantics = [#tpu.dimension_semantics<parallel>, #tpu.dimension_semantics<arbitrary>], iteration_bounds = array<i64: 1, 1>, scalar_prefetch = 0 : i64, scratch_operands = 3 : i64, tpu.core_type = #tpu.core_type<tc>, window_params = [{transform_indices = @transform_0, window_bounds = array<i64: 8, 64>}, {transform_indices = @transform_1, window_bounds = array<i64: 8, 8, 64>}, {transform_indices = @transform_2, window_bounds = array<i64: 8, 64>}]} {
    %c0_i32 = arith.constant 0 : i32
    %0 = arith.cmpi eq, %arg1, %c0_i32 : i32
    %1 = arith.extui %0 : i1 to i32
    %c0_i32_0 = arith.constant 0 : i32
    %2 = arith.cmpi ne, %1, %c0_i32_0 : i32
    scf.if %2 {
      %cst_22 = arith.constant 0xFF800000 : f32
      %37 = vector.broadcast %cst_22 : f32 to vector<8x1xf32>
      %c0_23 = arith.constant 0 : index
      %c0_24 = arith.constant 0 : index
      %38 = vector.load %arg5[%c0_23, %c0_24] : memref<8x1xf32, #tpu.memory_space<vmem>>, vector<8x1xf32>
      tpu.vector_store %arg5[%c0_23, %c0_24], %37 {strides = array<i32>} : memref<8x1xf32, #tpu.memory_space<vmem>>, vector<8x1xf32>,
      %cst_25 = arith.constant 0.000000e+00 : f32
      %39 = vector.broadcast %cst_25 : f32 to vector<8x1xf32>
      %c0_26 = arith.constant 0 : index
      %c0_27 = arith.constant 0 : index
      %40 = vector.load %arg6[%c0_26, %c0_27] : memref<8x1xf32, #tpu.memory_space<vmem>>, vector<8x1xf32>
      tpu.vector_store %arg6[%c0_26, %c0_27], %39 {strides = array<i32>} : memref<8x1xf32, #tpu.memory_space<vmem>>, vector<8x1xf32>,
      %cst_28 = arith.constant 0.000000e+00 : f32
      %41 = vector.broadcast %cst_28 : f32 to vector<8x64xf32>
      %c0_29 = arith.constant 0 : index
      %c0_30 = arith.constant 0 : index
      %42 = vector.load %arg7[%c0_29, %c0_30] : memref<8x64xf32, #tpu.memory_space<vmem>>, vector<8x64xf32>
      tpu.vector_store %arg7[%c0_29, %c0_30], %41 {strides = array<i32>} : memref<8x64xf32, #tpu.memory_space<vmem>>, vector<8x64xf32>,
    } else {
    }
    %c0 = arith.constant 0 : index
    %c0_1 = arith.constant 0 : index
    %3 = vector.load %arg2[%c0, %c0_1] : memref<8x64xf32, #tpu.memory_space<vmem>>, vector<8x64xf32>
    %c0_2 = arith.constant 0 : index
    %c0_3 = arith.constant 0 : index
    %c0_4 = arith.constant 0 : index
    %4 = vector.load %arg3[%c0_2, %c0_3, %c0_4] : memref<8x8x64xf32, #tpu.memory_space<vmem>>, vector<8x8x64xf32>
    %5 = vector.shape_cast %3 : vector<8x64xf32> to vector<8x1x64xf32>
    %6 = vector.broadcast %5 : vector<8x1x64xf32> to vector<8x8x64xf32>
    %7 = arith.mulf %6, %4 : vector<8x8x64xf32>
    %cst = arith.constant dense<0.000000e+00> : vector<8x8xf32>
    %8 = vector.multi_reduction <add>, %7, %cst [2] : vector<8x8x64xf32> to vector<8x8xf32>
    %c0_5 = arith.constant 0 : index
    %c0_6 = arith.constant 0 : index
    %9 = vector.load %arg5[%c0_5, %c0_6] : memref<8x1xf32, #tpu.memory_space<vmem>>, vector<8x1xf32>
    %cst_7 = arith.constant dense<0xFF800000> : vector<8xf32>
    %10 = vector.multi_reduction <maximumf>, %8, %cst_7 [1] : vector<8x8xf32> to vector<8xf32>
    %11 = vector.shape_cast %10 : vector<8xf32> to vector<8x1xf32>
    %12 = arith.maximumf %9, %11 : vector<8x1xf32>
    %13 = arith.subf %9, %12 : vector<8x1xf32>
    %14 = math.exp %13 : vector<8x1xf32>
    %15 = vector.broadcast %12 : vector<8x1xf32> to vector<8x8xf32>
    %16 = arith.subf %8, %15 : vector<8x8xf32>
    %17 = math.exp %16 : vector<8x8xf32>
    %c0_8 = arith.constant 0 : index
    %c0_9 = arith.constant 0 : index
    %18 = vector.load %arg6[%c0_8, %c0_9] : memref<8x1xf32, #tpu.memory_space<vmem>>, vector<8x1xf32>
    %19 = arith.mulf %14, %18 : vector<8x1xf32>
    %cst_10 = arith.constant dense<0.000000e+00> : vector<8xf32>
    %20 = vector.multi_reduction <add>, %17, %cst_10 [1] : vector<8x8xf32> to vector<8xf32>
    %21 = vector.shape_cast %20 : vector<8xf32> to vector<8x1xf32>
    %22 = arith.addf %19, %21 : vector<8x1xf32>
    %c0_11 = arith.constant 0 : index
    %c0_12 = arith.constant 0 : index
    %23 = vector.load %arg6[%c0_11, %c0_12] : memref<8x1xf32, #tpu.memory_space<vmem>>, vector<8x1xf32>
    tpu.vector_store %arg6[%c0_11, %c0_12], %22 {strides = array<i32>} : memref<8x1xf32, #tpu.memory_space<vmem>>, vector<8x1xf32>,
    %c0_13 = arith.constant 0 : index
    %c0_14 = arith.constant 0 : index
    %24 = vector.load %arg7[%c0_13, %c0_14] : memref<8x64xf32, #tpu.memory_space<vmem>>, vector<8x64xf32>
    %25 = vector.broadcast %14 : vector<8x1xf32> to vector<8x64xf32>
    %26 = arith.mulf %25, %24 : vector<8x64xf32>
    %27 = vector.shape_cast %17 : vector<8x8xf32> to vector<8x8x1xf32>
    %28 = vector.broadcast %27 : vector<8x8x1xf32> to vector<8x8x64xf32>
    %29 = arith.mulf %28, %4 : vector<8x8x64xf32>
    %cst_15 = arith.constant dense<0.000000e+00> : vector<8x64xf32>
    %30 = vector.multi_reduction <add>, %29, %cst_15 [1] : vector<8x8x64xf32> to vector<8x64xf32>
    %31 = arith.addf %26, %30 : vector<8x64xf32>
    %c0_16 = arith.constant 0 : index
    %c0_17 = arith.constant 0 : index
    %32 = vector.load %arg7[%c0_16, %c0_17] : memref<8x64xf32, #tpu.memory_space<vmem>>, vector<8x64xf32>
    tpu.vector_store %arg7[%c0_16, %c0_17], %31 {strides = array<i32>} : memref<8x64xf32, #tpu.memory_space<vmem>>, vector<8x64xf32>,
    %c0_18 = arith.constant 0 : index
    %c0_19 = arith.constant 0 : index
    %33 = vector.load %arg5[%c0_18, %c0_19] : memref<8x1xf32, #tpu.memory_space<vmem>>, vector<8x1xf32>
    tpu.vector_store %arg5[%c0_18, %c0_19], %12 {strides = array<i32>} : memref<8x1xf32, #tpu.memory_space<vmem>>, vector<8x1xf32>,
    %c0_i32_20 = arith.constant 0 : i32
    %34 = arith.cmpi eq, %arg1, %c0_i32_20 : i32
    %35 = arith.extui %34 : i1 to i32
    %c0_i32_21 = arith.constant 0 : i32
    %36 = arith.cmpi ne, %35, %c0_i32_21 : i32
    scf.if %36 {
      %c0_22 = arith.constant 0 : index
      %c0_23 = arith.constant 0 : index
      %37 = vector.load %arg6[%c0_22, %c0_23] : memref<8x1xf32, #tpu.memory_space<vmem>>, vector<8x1xf32>
      %38 = tpu.reciprocal %37 {approx = true} : vector<8x1xf32> -> vector<8x1xf32>
      %c0_24 = arith.constant 0 : index
      %c0_25 = arith.constant 0 : index
      %39 = vector.load %arg7[%c0_24, %c0_25] : memref<8x64xf32, #tpu.memory_space<vmem>>, vector<8x64xf32>
      %40 = vector.broadcast %38 : vector<8x1xf32> to vector<8x64xf32>
      %41 = arith.mulf %39, %40 : vector<8x64xf32>
      %c0_26 = arith.constant 0 : index
      %c0_27 = arith.constant 0 : index
      %42 = vector.load %arg4[%c0_26, %c0_27] : memref<8x64xf32, #tpu.memory_space<vmem>>, vector<8x64xf32>
      tpu.vector_store %arg4[%c0_26, %c0_27], %41 {strides = array<i32>} : memref<8x64xf32, #tpu.memory_space<vmem>>, vector<8x64xf32>,
    } else {
    }
    return
  }
  func.func @transform_0(%arg0: i32, %arg1: i32) -> (i32, i32) {
    %c0_i32 = arith.constant 0 : i32
    %c0_i32_0 = arith.constant 0 : i32
    return %arg0, %c0_i32 : i32, i32
  }
  func.func @transform_1(%arg0: i32, %arg1: i32) -> (i32, i32, i32) {
    %c0_i32 = arith.constant 0 : i32
    %c0_i32_0 = arith.constant 0 : i32
    return %arg0, %arg1, %c0_i32 : i32, i32, i32
  }
  func.func @transform_2(%arg0: i32, %arg1: i32) -> (i32, i32) {
    %c0_i32 = arith.constant 0 : i32
    %c0_i32_0 = arith.constant 0 : i32
    return %arg0, %c0_i32 : i32, i32
  }
}

</mosaic_0001>

<llo_original>
// kernel: tpu_custom_call.1
$region0: #{tpu_custom_call.1}
  #allocation0 [shape = 'u32[]', space=smem, size = 0x4, offset = 0x4, fixed_abs, tag = 'smem constant byte address 0x4 - core index']
  #allocation1 [shape = 'u32[144,128]{1,0:T(1,128)}', space=vmem, size = 0x12000, scoped, tag = 'internal scratch']
  #allocation2 [shape = 'f32[8,1]{1,0:T(8,128)}', space=vmem, size = 0x1000, scoped, tag = 'scratch operand']
  #allocation3 [shape = 'f32[8,1]{1,0:T(8,128)}', space=vmem, size = 0x1000, scoped, tag = 'scratch operand']
  #allocation4 [shape = 'f32[8,64]{1,0:T(8,128)}', space=vmem, size = 0x1000, scoped, tag = 'scratch operand']
  %s0 = inlined_call_operand.hbm [shape: f32[8,64], index: 0, kind: input, shape index: {}]
  %s1 = inlined_call_operand.hbm [shape: f32[8,8,64], index: 1, kind: input, shape index: {}]
  %s2 = inlined_call_operand.hbm [shape: f32[8,64], index: 2, kind: output, shape index: {}]
  %s3 = sld [smem:[#allocation0]]
  $region34: #{tpu_custom_call.1} parent=0
    _
  %s5 = ssub.s32 1, %s3
  %s6 = scalar_select 0, %s5, %s3
  $region1: #{tpu_custom_call.1} parent=0
    #allocation5 [shape = 'u8[4096]{0}', space=vmem, size = 0x1000, scoped, tag = 'input window, operand 0, single buffered']
    #allocation6 [shape = 's32[1]{0}', space=sflag, size = 0x4, scoped, tag = 'scoped memory for tpu_custom_call.1']
    #allocation7 [shape = 's32[1]{0}', space=sflag, size = 0x4, scoped, tag = 'scoped memory for tpu_custom_call.1']
    #allocation8 [shape = 'u8[32768]{0}', space=vmem, size = 0x8000, scoped, tag = 'input window, operand 1, single buffered']
    #allocation9 [shape = 's32[1]{0}', space=sflag, size = 0x4, scoped, tag = 'scoped memory for tpu_custom_call.1']
    #allocation10 [shape = 'u8[4096]{0}', space=vmem, size = 0x1000, scoped, tag = 'output window, operand 0, single buffered']
    %7 = vsyncpa [#allocation6], 0
    %8 = vsyncpa [#allocation9], 0
    %9 = vsyncpa [#allocation7], 0
    // Predicated region
    $region2: #{tpu_custom_call.1} parent=1 // pred_check
      _
    $region3: #{tpu_custom_call.1} parent=1 // pred_check_branch
      %11 = sbr.rel (0) target = $region5
    $region4: #{tpu_custom_call.1} parent=1 // pred_region
      %s13 = ssub.s32 128, 128
      %14 = vsyncadd [#allocation6], %s13
      %s16 = sshll.u32 [#allocation5], 4
      %s17 = int_to_ptr.vmem [resolvable:$true] %s16
      %19 = dma.hbm_to_vmem [thread:$0]  %s0, 128, %s17, [#allocation6]
    $region5: #{tpu_custom_call.1} parent=1 // pred_fallthru
      _
    // Predicated region
    $region6: #{tpu_custom_call.1} parent=1 // pred_check
      _
    $region7: #{tpu_custom_call.1} parent=1 // pred_check_branch
      %21 = sbr.rel (0) target = $region9
    $region8: #{tpu_custom_call.1} parent=1 // pred_region
      %s23 = ssub.s32 1024, 1024
      %24 = vsyncadd [#allocation9], %s23
      %s25 = sshll.u32 [#allocation8], 4
      %s26 = int_to_ptr.vmem [resolvable:$true] %s25
      %31 = dma.hbm_to_vmem [thread:$0]  %s1, 1024, %s26, [#allocation9], 128, 128, 8
    $region9: #{tpu_custom_call.1} parent=1 // pred_fallthru
      _
    // Predicated region
    $region10: #{tpu_custom_call.1} parent=1 // pred_check
      _
    $region11: #{tpu_custom_call.1} parent=1 // pred_check_branch
      %33 = sbr.rel (0) target = $region13
    $region12: #{tpu_custom_call.1} parent=1 // pred_region
      %34 = dma.done [#allocation6], 128
    $region13: #{tpu_custom_call.1} parent=1 // pred_fallthru
      _
    // Predicated region
    $region14: #{tpu_custom_call.1} parent=1 // pred_check
      _
    $region15: #{tpu_custom_call.1} parent=1 // pred_check_branch
      %36 = sbr.rel (0) target = $region17
    $region16: #{tpu_custom_call.1} parent=1 // pred_region
      %37 = dma.done [#allocation9], 1024
    $region17: #{tpu_custom_call.1} parent=1 // pred_fallthru
      _
    %p38 = scmp.eq.s32.totalorder 0, 0
    // Predicated region
    $region18: #{tpu_custom_call.1} parent=1 // pred_check
      %p39 = pneg %p38
    $region19: #{tpu_custom_call.1} parent=1 // pred_check_branch
      %41 = sbr.rel (%p39) target = $region21
    $region20: #{tpu_custom_call.1} parent=1 // pred_region
      %vm42 = vcmask 7168
      %43 = vst.msk [vmem:[#allocation2] sm:$0xff] %vm42, -inf
      %44 = vst.msk [vmem:[#allocation3] sm:$0xff] %vm42, 0.0
      %vm45 = vcmask 523264
      %46 = vst.msk [vmem:[#allocation4] sm:$0xff] %vm45, 0.0
    $region21: #{tpu_custom_call.1} parent=1 // pred_fallthru
      _
    %v47 = vld [vmem:[#allocation5] sm:$0xff]
    %v48 = vld [vmem:[#allocation8] sm:$0xff]
    %v49 = vld [vmem:[#allocation8 + $0x8] sm:$0xff]
    %v50 = vld [vmem:[#allocation8 + $0x10] sm:$0xff]
    %v51 = vld [vmem:[#allocation8 + $0x18] sm:$0xff]
    %v52 = vld [vmem:[#allocation8 + $0x20] sm:$0xff]
    %v53 = vld [vmem:[#allocation8 + $0x28] sm:$0xff]
    %v54 = vld [vmem:[#allocation8 + $0x30] sm:$0xff]
    %v55 = vld [vmem:[#allocation8 + $0x38] sm:$0xff]
    %v57 = vcombine.high %v47, %v47
    %v59 = vunpack.c.l.s4 1966171168
    %v60 = vunpack.c.0.s8 %v59
    %v61 = vlaneseq
    %v62 = vshrl.u32 %v61, 7
    %v63 = vsub.s32 %v60, %v62
    %v64 = vrot.slane %v47, %v63
    %v66 = vunpack.c.l.s4 1966171168
    %v67 = vunpack.c.0.s8 %v66
    %v68 = vlaneseq
    %v69 = vshrl.u32 %v68, 7
    %v70 = vsub.s32 %v67, %v69
    %v71 = vrot.slane %v57, %v70
    %v72 = vcombine.high %v64, %v64
    %v73 = vcombine.high %v71, %v71
    %v75 = vunpack.c.l.s4 1966171168
    %v76 = vunpack.c.0.s8 %v75
    %v77 = vlaneseq
    %v78 = vshrl.u32 %v77, 7
    %v79 = vsub.s32 %v76, %v78
    %v80 = vrot.slane %v64, %v79
    %v82 = vunpack.c.l.s4 1966171168
    %v83 = vunpack.c.0.s8 %v82
    %v84 = vlaneseq
    %v85 = vshrl.u32 %v84, 7
    %v86 = vsub.s32 %v83, %v85
    %v87 = vrot.slane %v71, %v86
    %v89 = vunpack.c.l.s4 1966171168
    %v90 = vunpack.c.0.s8 %v89
    %v91 = vlaneseq
    %v92 = vshrl.u32 %v91, 7
    %v93 = vsub.s32 %v90, %v92
    %v94 = vrot.slane %v72, %v93
    %v96 = vunpack.c.l.s4 1966171168
    %v97 = vunpack.c.0.s8 %v96
    %v98 = vlaneseq
    %v99 = vshrl.u32 %v98, 7
    %v100 = vsub.s32 %v97, %v99
    %v101 = vrot.slane %v73, %v100
    %v102 = vcombine.high %v80, %v80
    %v103 = vcombine.high %v87, %v87
    %v104 = vcombine.high %v94, %v94
    %v105 = vcombine.high %v101, %v101
    %v106 = vlaneseq
    %v107 = vshrl.u32 %v106, 7
    %v108 = vsub.s32 0, %v107
    %v109 = vrot.slane %v80, %v108
    %v110 = vlaneseq
    %v111 = vshrl.u32 %v110, 7
    %v112 = vsub.s32 0, %v111
    %v113 = vrot.slane %v94, %v112
    %v114 = vlaneseq
    %v115 = vshrl.u32 %v114, 7
    %v116 = vsub.s32 0, %v115
    %v117 = vrot.slane %v102, %v116
    %v118 = vlaneseq
    %v119 = vshrl.u32 %v118, 7
    %v120 = vsub.s32 0, %v119
    %v121 = vrot.slane %v104, %v120
    %v122 = vlaneseq
    %v123 = vshrl.u32 %v122, 7
    %v124 = vsub.s32 0, %v123
    %v125 = vrot.slane %v87, %v124
    %v126 = vlaneseq
    %v127 = vshrl.u32 %v126, 7
    %v128 = vsub.s32 0, %v127
    %v129 = vrot.slane %v101, %v128
    %v130 = vlaneseq
    %v131 = vshrl.u32 %v130, 7
    %v132 = vsub.s32 0, %v131
    %v133 = vrot.slane %v103, %v132
    %v134 = vlaneseq
    %v135 = vshrl.u32 %v134, 7
    %v136 = vsub.s32 0, %v135
    %v137 = vrot.slane %v105, %v136
    %v146 = vmul.f32 %v109, %v48
    %v147 = vmul.f32 %v113, %v49
    %v148 = vmul.f32 %v117, %v50
    %v149 = vmul.f32 %v121, %v51
    %v150 = vmul.f32 %v125, %v52
    %v151 = vmul.f32 %v129, %v53
    %v152 = vmul.f32 %v133, %v54
    %v153 = vmul.f32 %v137, %v55
    %vm154 = vcmask 523264
    %v155 = vsel %vm154, %v146, 0.0
    %156 = vadd.xlane.f32.xlu0 %v155
    %v157 = vpop.xlane.xlu0 %156
    %v158 = vsel %vm154, %v147, 0.0
    %159 = vadd.xlane.f32.xlu0 %v158
    %v160 = vpop.xlane.xlu0 %159
    %v161 = vsel %vm154, %v148, 0.0
    %162 = vadd.xlane.f32.xlu0 %v161
    %v163 = vpop.xlane.xlu0 %162
    %v164 = vsel %vm154, %v149, 0.0
    %165 = vadd.xlane.f32.xlu0 %v164
    %v166 = vpop.xlane.xlu0 %165
    %v167 = vsel %vm154, %v150, 0.0
    %168 = vadd.xlane.f32.xlu0 %v167
    %v169 = vpop.xlane.xlu0 %168
    %v170 = vsel %vm154, %v151, 0.0
    %171 = vadd.xlane.f32.xlu0 %v170
    %v172 = vpop.xlane.xlu0 %171
    %v173 = vsel %vm154, %v152, 0.0
    %174 = vadd.xlane.f32.xlu0 %v173
    %v175 = vpop.xlane.xlu0 %174
    %v176 = vsel %vm154, %v153, 0.0
    %177 = vadd.xlane.f32.xlu0 %v176
    %v178 = vpop.xlane.xlu0 %177
    %v179 = vld [vmem:[#allocation2] sm:$0xff]
    %v188 = vlaneseq
    %v189 = vand.u32 %v188, 127
    %v190 = vlaneseq
    %v191 = vshrl.u32 %v190, 7
    %v192 = vsub.s32 %v189, %v191
    %v193 = vrot.slane %v157, %v192
    %v194 = vlaneseq
    %v195 = vshrl.u32 %v194, 7
    %v196 = vsub.s32 %v189, %v195
    %v197 = vrot.slane %v160, %v196
    %v198 = vlaneseq
    %v199 = vshrl.u32 %v198, 7
    %v200 = vsub.s32 %v189, %v199
    %v201 = vrot.slane %v163, %v200
    %v202 = vlaneseq
    %v203 = vshrl.u32 %v202, 7
    %v204 = vsub.s32 %v189, %v203
    %v205 = vrot.slane %v166, %v204
    %v206 = vlaneseq
    %v207 = vshrl.u32 %v206, 7
    %v208 = vsub.s32 %v189, %v207
    %v209 = vrot.slane %v169, %v208
    %v210 = vlaneseq
    %v211 = vshrl.u32 %v210, 7
    %v212 = vsub.s32 %v189, %v211
    %v213 = vrot.slane %v172, %v212
    %v214 = vlaneseq
    %v215 = vshrl.u32 %v214, 7
    %v216 = vsub.s32 %v189, %v215
    %v217 = vrot.slane %v175, %v216
    %v218 = vlaneseq
    %v219 = vshrl.u32 %v218, 7
    %v220 = vsub.s32 %v189, %v219
    %v221 = vrot.slane %v178, %v220
    %vm222 = vcmask 1041409
    %v223 = vsel %vm222, %v197, %v193
    %vm224 = vcmask 1042434
    %v225 = vsel %vm224, %v201, %v223
    %vm226 = vcmask 1043459
    %v227 = vsel %vm226, %v205, %v225
    %vm228 = vcmask 1044484
    %v229 = vsel %vm228, %v209, %v227
    %vm230 = vcmask 1045509
    %v231 = vsel %vm230, %v213, %v229
    %vm232 = vcmask 1046534
    %v233 = vsel %vm232, %v217, %v231
    %vm234 = vcmask 1047559
    %v235 = vsel %vm234, %v221, %v233
    %vm237 = vcmask 64512
    %v238 = vsel %vm237, %v235, -inf
    %239 = vmax.xlane.f32.xlu0 %v238
    %v240 = vpop.xlane.xlu0 %239
    %v241 = vmax.f32 %v179, %v240
    %v242 = vsub.f32 %v179, %v241
    %v243 = vmul.f32 %v242, 1.442695
    %v244 = vpow.pop %v243
    %246 = vset.pattern.permute.xlu0 0
    %247 = vperm.xlu0 %246, %v241
    %v248 = vpop.permute.xlu0 %247
    %v249 = vlaneseq
    %v250 = vshrl.u32 %v249, 7
    %v251 = vsub.s32 0, %v250
    %v252 = vrot.slane %v248, %v251
    %v253 = vlaneseq
    %v254 = vshrl.u32 %v253, 7
    %v255 = vsub.s32 1, %v254
    %v256 = vrot.slane %v248, %v255
    %v257 = vlaneseq
    %v258 = vshrl.u32 %v257, 7
    %v259 = vsub.s32 2, %v258
    %v260 = vrot.slane %v248, %v259
    %v261 = vlaneseq
    %v262 = vshrl.u32 %v261, 7
    %v263 = vsub.s32 3, %v262
    %v264 = vrot.slane %v248, %v263
    %v265 = vlaneseq
    %v266 = vshrl.u32 %v265, 7
    %v267 = vsub.s32 4, %v266
    %v268 = vrot.slane %v248, %v267
    %v269 = vlaneseq
    %v270 = vshrl.u32 %v269, 7
    %v271 = vsub.s32 5, %v270
    %v272 = vrot.slane %v248, %v271
    %v273 = vlaneseq
    %v274 = vshrl.u32 %v273, 7
    %v275 = vsub.s32 6, %v274
    %v276 = vrot.slane %v248, %v275
    %v277 = vlaneseq
    %v278 = vshrl.u32 %v277, 7
    %v279 = vsub.s32 7, %v278
    %v280 = vrot.slane %v248, %v279
    %v289 = vsub.f32 %v157, %v252
    %v290 = vsub.f32 %v160, %v256
    %v291 = vsub.f32 %v163, %v260
    %v292 = vsub.f32 %v166, %v264
    %v293 = vsub.f32 %v169, %v268
    %v294 = vsub.f32 %v172, %v272
    %v295 = vsub.f32 %v175, %v276
    %v296 = vsub.f32 %v178, %v280
    %v297 = vmul.f32 %v289, 1.442695
    %v298 = vpow.pop %v297
    %v299 = vmul.f32 %v290, 1.442695
    %v300 = vpow.pop %v299
    %v301 = vmul.f32 %v291, 1.442695
    %v302 = vpow.pop %v301
    %v303 = vmul.f32 %v292, 1.442695
    %v304 = vpow.pop %v303
    %v305 = vmul.f32 %v293, 1.442695
    %v306 = vpow.pop %v305
    %v307 = vmul.f32 %v294, 1.442695
    %v308 = vpow.pop %v307
    %v309 = vmul.f32 %v295, 1.442695
    %v310 = vpow.pop %v309
    %v311 = vmul.f32 %v296, 1.442695
    %v312 = vpow.pop %v311
    %v313 = vld [vmem:[#allocation3] sm:$0xff]
    %v314 = vmul.f32 %v244, %v313
    %323 = vset.pattern.permute.xlu0 0
    %324 = vperm.xlu0 %323, %v298
    %v325 = vpop.permute.xlu0 %324
    %326 = vset.pattern.permute.xlu0 0
    %327 = vperm.xlu0 %326, %v300
    %v328 = vpop.permute.xlu0 %327
    %329 = vset.pattern.permute.xlu0 0
    %330 = vperm.xlu0 %329, %v302
    %v331 = vpop.permute.xlu0 %330
    %332 = vset.pattern.permute.xlu0 0
    %333 = vperm.xlu0 %332, %v304
    %v334 = vpop.permute.xlu0 %333
    %335 = vset.pattern.permute.xlu0 0
    %336 = vperm.xlu0 %335, %v306
    %v337 = vpop.permute.xlu0 %336
    %338 = vset.pattern.permute.xlu0 0
    %339 = vperm.xlu0 %338, %v308
    %v340 = vpop.permute.xlu0 %339
    %341 = vset.pattern.permute.xlu0 0
    %342 = vperm.xlu0 %341, %v310
    %v343 = vpop.permute.xlu0 %342
    %344 = vset.pattern.permute.xlu0 0
    %345 = vperm.xlu0 %344, %v312
    %v346 = vpop.permute.xlu0 %345
    %v347 = vlaneseq
    %v348 = vshrl.u32 %v347, 7
    %v349 = vsub.s32 %v189, %v348
    %v350 = vrot.slane %v325, %v349
    %v351 = vlaneseq
    %v352 = vshrl.u32 %v351, 7
    %v353 = vsub.s32 %v189, %v352
    %v354 = vrot.slane %v328, %v353
    %v355 = vlaneseq
    %v356 = vshrl.u32 %v355, 7
    %v357 = vsub.s32 %v189, %v356
    %v358 = vrot.slane %v331, %v357
    %v359 = vlaneseq
    %v360 = vshrl.u32 %v359, 7
    %v361 = vsub.s32 %v189, %v360
    %v362 = vrot.slane %v334, %v361
    %v363 = vlaneseq
    %v364 = vshrl.u32 %v363, 7
    %v365 = vsub.s32 %v189, %v364
    %v366 = vrot.slane %v337, %v365
    %v367 = vlaneseq
    %v368 = vshrl.u32 %v367, 7
    %v369 = vsub.s32 %v189, %v368
    %v370 = vrot.slane %v340, %v369
    %v371 = vlaneseq
    %v372 = vshrl.u32 %v371, 7
    %v373 = vsub.s32 %v189, %v372
    %v374 = vrot.slane %v343, %v373
    %v375 = vlaneseq
    %v376 = vshrl.u32 %v375, 7
    %v377 = vsub.s32 %v189, %v376
    %v378 = vrot.slane %v346, %v377
    %v379 = vsel %vm222, %v354, %v350
    %v380 = vsel %vm224, %v358, %v379
    %v381 = vsel %vm226, %v362, %v380
    %v382 = vsel %vm228, %v366, %v381
    %v383 = vsel %vm230, %v370, %v382
    %v384 = vsel %vm232, %v374, %v383
    %v385 = vsel %vm234, %v378, %v384
    %v387 = vsel %vm237, %v385, 0.0
    %388 = vadd.xlane.f32.xlu0 %v387
    %v389 = vpop.xlane.xlu0 %388
    %v390 = vadd.f32 %v314, %v389
    %vm391 = vcmask 7168
    %392 = vst.msk [vmem:[#allocation3] sm:$0xff] %vm391, %v390
    %v393 = vld [vmem:[#allocation4] sm:$0xff]
    %395 = vset.pattern.permute.xlu0 0
    %396 = vperm.xlu0 %395, %v244
    %v397 = vpop.permute.xlu0 %396
    %v399 = vmul.f32 %v397, %v393
    %v408 = vmul.f32 %v325, %v48
    %v409 = vmul.f32 %v328, %v49
    %v410 = vmul.f32 %v331, %v50
    %v411 = vmul.f32 %v334, %v51
    %v412 = vmul.f32 %v337, %v52
    %v413 = vmul.f32 %v340, %v53
    %v414 = vmul.f32 %v343, %v54
    %v415 = vmul.f32 %v346, %v55
    %v416 = vsel %vm154, %v408, 0.0
    %v417 = vrot.slane %v416, 4
    %v418 = vadd.f32 %v416, %v417
    %v419 = vrot.slane %v418, 2
    %v420 = vadd.f32 %v418, %v419
    %v421 = vrot.slane %v420, 1
    %v422 = vadd.f32 %v420, %v421
    %v423 = vsel %vm154, %v409, 0.0
    %v424 = vrot.slane %v423, 4
    %v425 = vadd.f32 %v423, %v424
    %v426 = vrot.slane %v425, 2
    %v427 = vadd.f32 %v425, %v426
    %v428 = vrot.slane %v427, 1
    %v429 = vadd.f32 %v427, %v428
    %v430 = vsel %vm154, %v410, 0.0
    %v431 = vrot.slane %v430, 4
    %v432 = vadd.f32 %v430, %v431
    %v433 = vrot.slane %v432, 2
    %v434 = vadd.f32 %v432, %v433
    %v435 = vrot.slane %v434, 1
    %v436 = vadd.f32 %v434, %v435
    %v437 = vsel %vm154, %v411, 0.0
    %v438 = vrot.slane %v437, 4
    %v439 = vadd.f32 %v437, %v438
    %v440 = vrot.slane %v439, 2
    %v441 = vadd.f32 %v439, %v440
    %v442 = vrot.slane %v441, 1
    %v443 = vadd.f32 %v441, %v442
    %v444 = vsel %vm154, %v412, 0.0
    %v445 = vrot.slane %v444, 4
    %v446 = vadd.f32 %v444, %v445
    %v447 = vrot.slane %v446, 2
    %v448 = vadd.f32 %v446, %v447
    %v449 = vrot.slane %v448, 1
    %v450 = vadd.f32 %v448, %v449
    %v451 = vsel %vm154, %v413, 0.0
    %v452 = vrot.slane %v451, 4
    %v453 = vadd.f32 %v451, %v452
    %v454 = vrot.slane %v453, 2
    %v455 = vadd.f32 %v453, %v454
    %v456 = vrot.slane %v455, 1
    %v457 = vadd.f32 %v455, %v456
    %v458 = vsel %vm154, %v414, 0.0
    %v459 = vrot.slane %v458, 4
    %v460 = vadd.f32 %v458, %v459
    %v461 = vrot.slane %v460, 2
    %v462 = vadd.f32 %v460, %v461
    %v463 = vrot.slane %v462, 1
    %v464 = vadd.f32 %v462, %v463
    %v465 = vsel %vm154, %v415, 0.0
    %v466 = vrot.slane %v465, 4
    %v467 = vadd.f32 %v465, %v466
    %v468 = vrot.slane %v467, 2
    %v469 = vadd.f32 %v467, %v468
    %v470 = vrot.slane %v469, 1
    %v471 = vadd.f32 %v469, %v470
    %v480 = vsel %vm222, %v429, %v422
    %v481 = vsel %vm224, %v436, %v480
    %v482 = vsel %vm226, %v443, %v481
    %v483 = vsel %vm228, %v450, %v482
    %v484 = vsel %vm230, %v457, %v483
    %v485 = vsel %vm232, %v464, %v484
    %v486 = vsel %vm234, %v471, %v485
    %v488 = vadd.f32 %v399, %v486
    %489 = vst.msk [vmem:[#allocation4] sm:$0xff] %vm154, %v488
    %490 = vst.msk [vmem:[#allocation2] sm:$0xff] %vm391, %v241
    // Predicated region
    $region22: #{tpu_custom_call.1} parent=1 // pred_check
      %p491 = pneg %p38
    $region23: #{tpu_custom_call.1} parent=1 // pred_check_branch
      %493 = sbr.rel (%p491) target = $region25
    $region24: #{tpu_custom_call.1} parent=1 // pred_region
      %v494 = vld [vmem:[#allocation3] sm:$0xff]
      %v495 = vrcp.pop %v494
      %v496 = vld [vmem:[#allocation4] sm:$0xff]
      %498 = vset.pattern.permute.xlu0 0
      %499 = vperm.xlu0 %498, %v495
      %v500 = vpop.permute.xlu0 %499
      %v502 = vmul.f32 %v496, %v500
      %503 = vst.msk [vmem:[#allocation10] sm:$0xff] %vm154, %v502
    $region25: #{tpu_custom_call.1} parent=1 // pred_fallthru
      _
    // Predicated region
    $region26: #{tpu_custom_call.1} parent=1 // pred_check
      _
    $region27: #{tpu_custom_call.1} parent=1 // pred_check_branch
      %505 = sbr.rel (0) target = $region29
    $region28: #{tpu_custom_call.1} parent=1 // pred_region
      %s507 = ssub.s32 128, 128
      %508 = vsyncadd [#allocation7], %s507
      %s510 = sshll.u32 [#allocation10], 4
      %s511 = int_to_ptr.vmem [resolvable:$true] %s510
      %513 = dma.vmem_to_hbm [thread:$0]  %s511, 128, %s2, [#allocation7]
    $region29: #{tpu_custom_call.1} parent=1 // pred_fallthru
      _
    // Predicated region
    $region30: #{tpu_custom_call.1} parent=1 // pred_check
      _
    $region31: #{tpu_custom_call.1} parent=1 // pred_check_branch
      %515 = sbr.rel (0) target = $region33
    $region32: #{tpu_custom_call.1} parent=1 // pred_region
      %516 = dma.done [#allocation7], 128
    $region33: #{tpu_custom_call.1} parent=1 // pred_fallthru
      _
    %517 = vsyncpa [#allocation6], 1
    %518 = vsyncpa [#allocation9], 1
    %519 = vsyncpa [#allocation7], 1

</llo_original>
